<compile_context>
chip_gen: v7x
topology: tpu7x:2x2x1
jax: 0.10.0
libtpu: 0.0.40
codegen_flags: <defaults>
</compile_context>

<pallas_src>
import functools

import jax
import jax.numpy as jnp
from jax.experimental import pallas as pl
from jax.experimental.pallas import tpu as pltpu


def policy_kernel(x_ref, w1_ref, b1_ref, w2_ref, b2_ref, o_ref):
    # Feature-major layout: x_ref is (9, TB) with the batch on the 128-lane
    # axis, so every load/store is a full-lane unmasked vld/vst.
    x = x_ref[...].astype(jnp.bfloat16)                              # (9, TB)

    # Layer 1: (32, 9) @ (9, TB) -> (32, TB), +bias, ReLU.  bf16 MXU operands,
    # f32 accumulate.
    h = jnp.dot(w1_ref[...].astype(jnp.bfloat16), x,
                preferred_element_type=jnp.float32)                  # (32, TB)
    h = jnp.maximum(h + b1_ref[...], 0.0)

    # Layer 2: (9, 32) @ (32, TB) -> (9, TB), +bias.
    logits = jnp.dot(w2_ref[...].astype(jnp.bfloat16), h.astype(jnp.bfloat16),
                     preferred_element_type=jnp.float32)             # (9, TB)
    logits = logits + b2_ref[...]

    # Numerically-stable softmax over the 9 feature rows (PyTorch dim=1 of the
    # untransposed (B, 9) layout).
    m = jnp.max(logits, axis=0, keepdims=True)
    e = jnp.exp(logits - m)
    denom = jnp.sum(e, axis=0, keepdims=True)
    # Exact divide (not approx reciprocal): probabilities sum to 1 to f32
    # precision.  The divide is EUP work, negligible for a mem-bound kernel.
    o_ref[...] = e / denom


def _round_up(n, m):
    return ((n + m - 1) // m) * m


def _ceil_div(a, b):
    return -(-a // b)


def _pick_tiling(batch, tile_b):
    """Pick (tile, padded_batch, n_tiles).

    The lane (batch) axis of each tile is a multiple of 128.  Whenever the
    128-rounded batch is >= 256 we force at least 2 tiles so
    dimension_semantics=("parallel",) has something to shard across the two
    TensorCores on v7x, and we divide the batch as evenly as possible across
    tiles to minimize padding waste.
    """
    b128 = _round_up(max(batch, 1), 128)
    tile_cap = max(128, _round_up(tile_b, 128))
    min_tiles = 2 if b128 >= 256 else 1
    n_tiles = max(min_tiles, _ceil_div(b128, tile_cap))
    tb = min(tile_cap, _round_up(_ceil_div(b128, n_tiles), 128))
    return tb, tb * n_tiles, n_tiles


def _policy_forward_fm(xT, w1, b1, w2, b2, tile_b):
    """Feature-major core: xT is (9, B) f32, returns (9, B) probabilities.

    No transposes are materialized here; keep this layout end-to-end when the
    producer/consumer allow it (zero extra HBM traffic).
    """
    B = xT.shape[1]
    tb, Bp, n_tiles = _pick_tiling(B, tile_b)
    if Bp != B:
        # Padded columns run a valid softmax (no NaN/Inf) and are sliced away
        # below; they never leak to the caller.
        xT = jnp.pad(xT, ((0, 0), (0, Bp - B)))

    out_T = pl.pallas_call(
        policy_kernel,
        out_shape=jax.ShapeDtypeStruct((9, Bp), jnp.float32),
        grid=(n_tiles,),
        in_specs=[
            pl.BlockSpec((9, tb), lambda i: (0, i)),     # x tile (pipelined)
            pl.BlockSpec((32, 9), lambda i: (0, 0)),     # w1 (VMEM-resident)
            pl.BlockSpec((32, 1), lambda i: (0, 0)),     # b1 (VMEM-resident)
            pl.BlockSpec((9, 32), lambda i: (0, 0)),     # w2 (VMEM-resident)
            pl.BlockSpec((9, 1), lambda i: (0, 0)),      # b2 (VMEM-resident)
        ],
        out_specs=pl.BlockSpec((9, tb), lambda i: (0, i)),
        compiler_params=pltpu.CompilerParams(
            # Shard batch tiles across both TensorCores on v7x.
            dimension_semantics=("parallel",),
            # Let XLA fuse the producer of x (transpose / pad) into the
            # pallas_call input read instead of a separate HBM round trip.
            allow_input_fusion=[True, False, False, False, False],
            # Per-tile VMEM (f32 unless noted): x/out (9,tb)*2 double-buffered
            # ~4.5 MiB, hidden h (32,tb) ~4 MiB, logits/exp (9,tb) ~2.3 MiB,
            # bf16 copies ~2.8 MiB at tb=32768 -> ~14 MiB + headroom.  32 MiB
            # raises v5e's 16 MiB scoped default and fits v6e/v7x limits.
            vmem_limit_bytes=32 * 1024 * 1024,
        ),
    )(xT, w1, b1, w2, b2)

    return out_T[:, :B] if Bp != B else out_T


@functools.partial(jax.jit, static_argnames=("tile_b",))
def policy_net_forward(x, w1, b1, w2, b2, *, tile_b=32768):
    """PyTorch-layout entry point.

    x: (B, 9) f32.  w1: (32, 9), b1: (32, 1), w2: (9, 32), b2: (9, 1).
    Returns softmax probabilities, shape (B, 9) f32.

    The x.T here is a layout hint; allow_input_fusion lets XLA fuse it into
    the pallas_call input DMA.  For zero extra traffic on both sides, use
    policy_net_forward_features_major with a (9, B) activation instead.
    """
    return _policy_forward_fm(x.T, w1, b1, w2, b2, tile_b).T


@functools.partial(jax.jit, static_argnames=("tile_b",))
def policy_net_forward_features_major(xT, w1, b1, w2, b2, *, tile_b=32768):
    """Feature-major entry point: xT (9, B) -> (9, B).  No transposes."""
    return _policy_forward_fm(xT, w1, b1, w2, b2, tile_b)


def init_params(key):
    """Deterministic synthetic parameters matching PyTorch Linear shapes.

    nn.Linear(9, 32): weight (32, 9), bias (32,)
    nn.Linear(32, 9): weight (9, 32), bias (9,)
    The feature-major kernel uses the native (out, in) weight shapes directly;
    biases are stored as (out, 1) columns.
    """
    k1, k2, k3, k4 = jax.random.split(key, 4)
    bound1 = 1.0 / jnp.sqrt(9.0)
    bound2 = 1.0 / jnp.sqrt(32.0)
    w1 = jax.random.uniform(k1, (32, 9), jnp.float32, -bound1, bound1)
    b1 = jax.random.uniform(k2, (32, 1), jnp.float32, -bound1, bound1)
    w2 = jax.random.uniform(k3, (9, 32), jnp.float32, -bound2, bound2)
    b2 = jax.random.uniform(k4, (9, 1), jnp.float32, -bound2, bound2)
    return w1, b1, w2, b2


def policy_net_reference(x, w1, b1, w2, b2):
    # Same math in PyTorch's (B, in) layout, full f32: x @ W^T + b.
    h = jnp.maximum(x @ w1.T + b1.reshape(1, -1), 0.0)
    logits = h @ w2.T + b2.reshape(1, -1)
    return jax.nn.softmax(logits, axis=1)


if __name__ == "__main__":
    key = jax.random.PRNGKey(0)
    pkey, xkey, xkey2 = jax.random.split(key, 3)

    w1, b1, w2, b2 = init_params(pkey)

    # Small demo batch (matches the module's (B, 9) input).
    x = jax.random.normal(xkey, (2, 9), jnp.float32)
    out = jax.block_until_ready(policy_net_forward(x, w1, b1, w2, b2))
    ref = policy_net_reference(x, w1, b1, w2, b2)
    assert out.shape == (2, 9)
    # bf16 MXU operands vs. the pure-f32 reference: allow ~1e-2.
    assert jnp.allclose(out, ref, atol=1e-2, rtol=1e-2)
    # Exact softmax divide: rows sum to 1 to (near) f32 precision.
    assert jnp.allclose(jnp.sum(out, axis=1), jnp.ones((2,)), atol=1e-4)

    # Exercise the tiled/padded path (multiple grid steps + remainder pad).
    x_big = jax.random.normal(xkey2, (300, 9), jnp.float32)
    out_big = jax.block_until_ready(
        policy_net_forward(x_big, w1, b1, w2, b2, tile_b=128))
    ref_big = policy_net_reference(x_big, w1, b1, w2, b2)
    assert out_big.shape == (300, 9)
    assert jnp.allclose(out_big, ref_big, atol=1e-2, rtol=1e-2)
    assert jnp.allclose(jnp.sum(out_big, axis=1), jnp.ones((300,)), atol=1e-4)

    # Feature-major end-to-end path (no wrapper transposes at all).
    out_fm = jax.block_until_ready(
        policy_net_forward_features_major(x_big.T, w1, b1, w2, b2, tile_b=128))
    assert out_fm.shape == (9, 300)
    assert jnp.allclose(out_fm.T, ref_big, atol=1e-2, rtol=1e-2)

    print("KERNEL_OK")
</pallas_src>

<mosaic_0001>
module attributes {stable_mosaic.version = 11 : i64} {
  func.func @policy_kernel(%arg0: i32, %arg1: memref<9x128xf32, #tpu.memory_space<vmem>>, %arg2: memref<32x9xf32, #tpu.memory_space<vmem>>, %arg3: memref<32x1xf32, #tpu.memory_space<vmem>>, %arg4: memref<9x32xf32, #tpu.memory_space<vmem>>, %arg5: memref<9x1xf32, #tpu.memory_space<vmem>>, %arg6: memref<9x128xf32, #tpu.memory_space<vmem>>) attributes {dimension_semantics = [#tpu.dimension_semantics<parallel>], iteration_bounds = array<i64: 1>, scalar_prefetch = 0 : i64, scratch_operands = 0 : i64, tpu.core_type = #tpu.core_type<tc>, window_params = [{transform_indices = @transform_0, window_bounds = array<i64: 9, 128>}, {pipeline_mode = #tpu.pipeline_mode<synchronous>, transform_indices = @transform_1, window_bounds = array<i64: 32, 9>}, {pipeline_mode = #tpu.pipeline_mode<synchronous>, transform_indices = @transform_2, window_bounds = array<i64: 32, 1>}, {pipeline_mode = #tpu.pipeline_mode<synchronous>, transform_indices = @transform_3, window_bounds = array<i64: 9, 32>}, {pipeline_mode = #tpu.pipeline_mode<synchronous>, transform_indices = @transform_4, window_bounds = array<i64: 9, 1>}, {transform_indices = @transform_5, window_bounds = array<i64: 9, 128>}]} {
    %c0 = arith.constant 0 : index
    %c0_0 = arith.constant 0 : index
    %0 = vector.load %arg1[%c0, %c0_0] : memref<9x128xf32, #tpu.memory_space<vmem>>, vector<9x128xf32>
    %1 = arith.truncf %0 : vector<9x128xf32> to vector<9x128xbf16>
    %c0_1 = arith.constant 0 : index
    %c0_2 = arith.constant 0 : index
    %2 = vector.load %arg2[%c0_1, %c0_2] : memref<32x9xf32, #tpu.memory_space<vmem>>, vector<32x9xf32>
    %3 = arith.truncf %2 : vector<32x9xf32> to vector<32x9xbf16>
    %cst = arith.constant dense<0.000000e+00> : vector<32x128xf32>
    %4 = tpu.matmul %3, %1, %cst {dimension_numbers = #tpu.dot_dimension_numbers<[1], [0], [0], [1], [0, 0, 1, 1], [], []>} : vector<32x9xbf16>, vector<9x128xbf16>, vector<32x128xf32> -> vector<32x128xf32>
    %c0_3 = arith.constant 0 : index
    %c0_4 = arith.constant 0 : index
    %5 = vector.load %arg3[%c0_3, %c0_4] : memref<32x1xf32, #tpu.memory_space<vmem>>, vector<32x1xf32>
    %6 = vector.broadcast %5 : vector<32x1xf32> to vector<32x128xf32>
    %7 = arith.addf %4, %6 : vector<32x128xf32>
    %cst_5 = arith.constant 0.000000e+00 : f32
    %8 = vector.broadcast %cst_5 : f32 to vector<32x128xf32>
    %9 = arith.maximumf %7, %8 : vector<32x128xf32>
    %c0_6 = arith.constant 0 : index
    %c0_7 = arith.constant 0 : index
    %10 = vector.load %arg4[%c0_6, %c0_7] : memref<9x32xf32, #tpu.memory_space<vmem>>, vector<9x32xf32>
    %11 = arith.truncf %10 : vector<9x32xf32> to vector<9x32xbf16>
    %12 = arith.truncf %9 : vector<32x128xf32> to vector<32x128xbf16>
    %cst_8 = arith.constant dense<0.000000e+00> : vector<9x128xf32>
    %13 = tpu.matmul %11, %12, %cst_8 {dimension_numbers = #tpu.dot_dimension_numbers<[1], [0], [0], [1], [0, 0, 1, 1], [], []>} : vector<9x32xbf16>, vector<32x128xbf16>, vector<9x128xf32> -> vector<9x128xf32>
    %c0_9 = arith.constant 0 : index
    %c0_10 = arith.constant 0 : index
    %14 = vector.load %arg5[%c0_9, %c0_10] : memref<9x1xf32, #tpu.memory_space<vmem>>, vector<9x1xf32>
    %15 = vector.broadcast %14 : vector<9x1xf32> to vector<9x128xf32>
    %16 = arith.addf %13, %15 : vector<9x128xf32>
    %cst_11 = arith.constant dense<0xFF800000> : vector<128xf32>
    %17 = vector.multi_reduction <maximumf>, %16, %cst_11 [0] : vector<9x128xf32> to vector<128xf32>
    %18 = vector.shape_cast %17 : vector<128xf32> to vector<1x128xf32>
    %19 = vector.broadcast %18 : vector<1x128xf32> to vector<9x128xf32>
    %20 = arith.subf %16, %19 : vector<9x128xf32>
    %21 = math.exp %20 : vector<9x128xf32>
    %cst_12 = arith.constant dense<0.000000e+00> : vector<128xf32>
    %22 = vector.multi_reduction <add>, %21, %cst_12 [0] : vector<9x128xf32> to vector<128xf32>
    %23 = vector.shape_cast %22 : vector<128xf32> to vector<1x128xf32>
    %24 = vector.broadcast %23 : vector<1x128xf32> to vector<9x128xf32>
    %25 = arith.divf %21, %24 : vector<9x128xf32>
    %c0_13 = arith.constant 0 : index
    %c0_14 = arith.constant 0 : index
    %26 = vector.load %arg6[%c0_13, %c0_14] : memref<9x128xf32, #tpu.memory_space<vmem>>, vector<9x128xf32>
    tpu.vector_store %arg6[%c0_13, %c0_14], %25 {strides = array<i32>} : memref<9x128xf32, #tpu.memory_space<vmem>>, vector<9x128xf32>,
    return
  }
  func.func @transform_0(%arg0: i32) -> (i32, i32) {
    %c0_i32 = arith.constant 0 : i32
    %c0_i32_0 = arith.constant 0 : i32
    return %c0_i32, %arg0 : i32, i32
  }
  func.func @transform_1(%arg0: i32) -> (i32, i32) {
    %c0_i32 = arith.constant 0 : i32
    %c0_i32_0 = arith.constant 0 : i32
    %c0_i32_1 = arith.constant 0 : i32
    return %c0_i32, %c0_i32_0 : i32, i32
  }
  func.func @transform_2(%arg0: i32) -> (i32, i32) {
    %c0_i32 = arith.constant 0 : i32
    %c0_i32_0 = arith.constant 0 : i32
    %c0_i32_1 = arith.constant 0 : i32
    return %c0_i32, %c0_i32_0 : i32, i32
  }
  func.func @transform_3(%arg0: i32) -> (i32, i32) {
    %c0_i32 = arith.constant 0 : i32
    %c0_i32_0 = arith.constant 0 : i32
    %c0_i32_1 = arith.constant 0 : i32
    return %c0_i32, %c0_i32_0 : i32, i32
  }
  func.func @transform_4(%arg0: i32) -> (i32, i32) {
    %c0_i32 = arith.constant 0 : i32
    %c0_i32_0 = arith.constant 0 : i32
    %c0_i32_1 = arith.constant 0 : i32
    return %c0_i32, %c0_i32_0 : i32, i32
  }
  func.func @transform_5(%arg0: i32) -> (i32, i32) {
    %c0_i32 = arith.constant 0 : i32
    %c0_i32_0 = arith.constant 0 : i32
    return %c0_i32, %arg0 : i32, i32
  }
}

</mosaic_0001>

<llo_original>
// kernel: policy_net_forward.2
$region0: #{policy_net_forward.2}
  #allocation0 [shape = 'u32[]', space=smem, size = 0x4, offset = 0x4, fixed_abs, tag = 'smem constant byte address 0x4 - core index']
  #allocation1 [shape = 'u32[144,128]{1,0:T(1,128)}', space=vmem, size = 0x12000, scoped, tag = 'internal scratch']
  #allocation2 [shape = 'u32[2048]{0}', space=vmem, size = 0x2000, scoped, tag = 'scoped memory for policy_net_forward.2']
  #allocation3 [shape = 'u32[2048]{0}', space=vmem, size = 0x2000, scoped, tag = 'scoped memory for policy_net_forward.2']
  #allocation4 [shape = 'u32[2048]{0}', space=vmem, size = 0x2000, scoped, tag = 'scoped memory for policy_net_forward.2']
  #allocation5 [shape = 'u32[2048]{0}', space=vmem, size = 0x2000, scoped, tag = 'scoped memory for policy_net_forward.2']
  #allocation6 [shape = 'u32[2048]{0}', space=vmem, size = 0x2000, scoped, tag = 'scoped memory for policy_net_forward.2']
  %s0 = inlined_call_operand.vmem [shape: f32[32,9], index: 0, kind: input, shape index: {}]
  %s1 = inlined_call_operand.vmem [shape: f32[32,1], index: 1, kind: input, shape index: {}]
  %s2 = inlined_call_operand.vmem [shape: f32[9,32], index: 2, kind: input, shape index: {}]
  %s3 = inlined_call_operand.vmem [shape: f32[9,1], index: 3, kind: input, shape index: {}]
  %s4 = inlined_call_operand.vmem [shape: f32[9,2], index: 4, kind: input, shape index: {}]
  %s5 = inlined_call_operand.<no memory space> [shape: f32[], index: 5, kind: input, shape index: {}]
  %s6 = inlined_call_operand.vmem [shape: f32[9,128], index: 6, kind: output, shape index: {}]
  %s7 = sld [smem:[#allocation0]]
  $region30: #{policy_net_forward.2} parent=0
    _
  %s9 = ssub.s32 1, %s7
  %s10 = scalar_select 0, %s9, %s7
  %v11 = vstv %s5
  $region1: #{policy_net_forward.2} parent=0
    #allocation7 [shape = 'u8[8192]{0}', space=vmem, size = 0x2000, dematerialized = true, scoped, tag = 'FusionAdapter Buffer %fusion.1 = f32[9,128]{1,0:T(8,128)} fusion(%param_4.1, %param_5), kind=kLoop, calls=%fused_computation.2.clone, metadata={op_name="jit(policy_net_forward)/jit(_pad)/pad" stack_frame_id=9}']
    // Predicated region
    $region2: #{policy_net_forward.2} parent=1 // pred_check
      _
    $region3: #{policy_net_forward.2} parent=1 // pred_check_branch
      %13 = sbr.rel (0) target = $region5
    $region4: #{policy_net_forward.2} parent=1 // pred_region
      _
    $region5: #{policy_net_forward.2} parent=1 // pred_fallthru
      _
    // Predicated region
    $region6: #{policy_net_forward.2} parent=1 // pred_check
      _
    $region7: #{policy_net_forward.2} parent=1 // pred_check_branch
      %15 = sbr.rel (0) target = $region9
    $region8: #{policy_net_forward.2} parent=1 // pred_region
      _
    $region9: #{policy_net_forward.2} parent=1 // pred_fallthru
      _
    // Predicated region
    $region10: #{policy_net_forward.2} parent=1 // pred_check
      _
    $region11: #{policy_net_forward.2} parent=1 // pred_check_branch
      %17 = sbr.rel (0) target = $region13
    $region12: #{policy_net_forward.2} parent=1 // pred_region
      _
    $region13: #{policy_net_forward.2} parent=1 // pred_fallthru
      _
    // Predicated region
    $region14: #{policy_net_forward.2} parent=1 // pred_check
      _
    $region15: #{policy_net_forward.2} parent=1 // pred_check_branch
      %19 = sbr.rel (0) target = $region17
    $region16: #{policy_net_forward.2} parent=1 // pred_region
      _
    $region17: #{policy_net_forward.2} parent=1 // pred_fallthru
      _
    // Predicated region
    $region18: #{policy_net_forward.2} parent=1 // pred_check
      _
    $region19: #{policy_net_forward.2} parent=1 // pred_check_branch
      %21 = sbr.rel (0) target = $region21
    $region20: #{policy_net_forward.2} parent=1 // pred_region
      _
    $region21: #{policy_net_forward.2} parent=1 // pred_fallthru
      _
    %v22 = vld [vmem:[%s4] sm:$0xff]
    %v23 = vlaneseq
    %v24 = vshrl.u32 %v23, 7
    %vm26 = vcmp.lt.s32.totalorder %v24, 9
    %v27 = vsel %vm26, %v22, %v11
    %v28 = vlaneseq
    %v29 = vand.u32 %v28, 127
    %vm31 = vcmp.lt.s32.totalorder %v29, 2
    %v32 = vsel %vm31, %v27, %v11
    %34 = vst [vmem:[#allocation7] sm:$0xff] %v32
    %s35 = scalar_lea.vmem %s4, 8
    %v36 = vld [vmem:[%s35] sm:$0xff]
    %v37 = vlaneseq
    %v38 = vshrl.u32 %v37, 7
    %v39 = vadd.s32 %v38, 8
    %vm40 = vcmp.lt.s32.totalorder %v39, 9
    %v41 = vsel %vm40, %v36, %v11
    %v42 = vlaneseq
    %v43 = vand.u32 %v42, 127
    %vm45 = vcmp.lt.s32.totalorder %v43, 2
    %v46 = vsel %vm45, %v41, %v11
    %s47 = scalar_lea.vmem [#allocation7], 8
    %49 = vst [vmem:[%s47] sm:$0xff] %v46
    %v51 = vld [vmem:[#allocation7] sm:$0xff]
    %v52 = vld [vmem:[#allocation7 + $0x8] sm:$0x1]
    %v53 = vpack.c.bf16 %v52, %v51
    %v54 = vld [vmem:[%s0] sm:$0xff]
    %v55 = vld [vmem:[%s0 + $0x8] sm:$0xff]
    %v56 = vld [vmem:[%s0 + $0x10] sm:$0xff]
    %v57 = vld [vmem:[%s0 + $0x18] sm:$0xff]
    %v58 = vpack.c.bf16 %v55, %v54
    %v59 = vpack.c.bf16 %v57, %v56
    %v60 = vld [vmem:[%s1] sm:$0xff]
    %v61 = vld [vmem:[%s1 + $0x8] sm:$0xff]
    %v62 = vld [vmem:[%s1 + $0x10] sm:$0xff]
    %v63 = vld [vmem:[%s1 + $0x18] sm:$0xff]
    %65 = vset.pattern.permute.xlu0 0
    %66 = vperm.xlu0 %65, %v60
    %v67 = vpop.permute.xlu0 %66
    %70 = vset.pattern.permute.xlu0 0
    %71 = vperm.xlu0 %70, %v61
    %v72 = vpop.permute.xlu0 %71
    %75 = vset.pattern.permute.xlu0 0
    %76 = vperm.xlu0 %75, %v62
    %v77 = vpop.permute.xlu0 %76
    %80 = vset.pattern.permute.xlu0 0
    %81 = vperm.xlu0 %80, %v63
    %v82 = vpop.permute.xlu0 %81
    %vm84 = vcmask 72704
    %v86 = vsel %vm84, %v58, 0
    %v89 = vsel %vm84, %v59, 0
    %vm91 = vcmask 1043456
    %vm92 = vcmask 1044480
    %v93 = vsel %vm91, 4294967295, 65535
    %v94 = vsel %vm92, %v93, 0
    %v96 = vand.u32 %v53, %v94
    %98 = vmatprep.subr.bf16.mxu0 0
    %99 = vmatpush1.bf16.msra.mxu0 %v96
    %100 = vmatprep.subr.bf16.mxu0 0
    %101 = vmatpush1.bf16.msra.mxu0 0
    %102 = vmatprep.subr.bf16.mxu0 0
    %103 = vmatpush1.bf16.msra.mxu0 0
    %104 = vmatprep.subr.bf16.mxu0 0
    %105 = vmatpush1.bf16.msra.mxu0 0
    %106 = vmatprep.subr.bf16.mxu0 0
    %107 = vmatpush1.bf16.msra.mxu0 0
    %108 = vmatprep.subr.bf16.mxu0 0
    %109 = vmatpush1.bf16.msra.mxu0 0
    %110 = vmatprep.subr.bf16.mxu0 0
    %111 = vmatpush1.bf16.msra.mxu0 0
    %112 = vmatprep.subr.bf16.mxu0 0
    %113 = vmatpush1.bf16.msra.mxu0 0
    %114 = vmatprep.subr.bf16.mxu0 0
    %115 = vmatpush1.bf16.msra.mxu0 0
    %116 = vmatprep.subr.bf16.mxu0 0
    %117 = vmatpush1.bf16.msra.mxu0 0
    %118 = vmatprep.subr.bf16.mxu0 0
    %119 = vmatpush1.bf16.msra.mxu0 0
    %120 = vmatprep.subr.bf16.mxu0 0
    %121 = vmatpush1.bf16.msra.mxu0 0
    %122 = vmatprep.subr.bf16.mxu0 0
    %123 = vmatpush1.bf16.msra.mxu0 0
    %124 = vmatprep.subr.bf16.mxu0 0
    %125 = vmatpush1.bf16.msra.mxu0 0
    %126 = vmatprep.subr.bf16.mxu0 0
    %127 = vmatpush1.bf16.msra.mxu0 0
    %128 = vmatprep.subr.bf16.mxu0 0
    %129 = vmatpush1.bf16.msra.mxu0 0
    %130 = vmatprep.mubr.bf16.mxu0 0
    %131 = vmatmul.mubr.bf16.gmra.mrb[0].mxu0 %v86
    %v132 = vpop.f32.mrb[0].mxu0
    %v133 = vadd.f32 %v67, %v132
    %v134 = vpop.f32.mrb[0].mxu0
    %v135 = vpop.f32.mrb[0].mxu0
    %v136 = vadd.f32 %v72, %v135
    %v137 = vpop.f32.mrb[0].mxu0
    %138 = vmatprep.mubr.bf16.mxu0 0
    %139 = vmatmul.mubr.bf16.gmra.mrb[0].mxu0 %v89
    %v140 = vpop.f32.mrb[0].mxu0
    %v141 = vadd.f32 %v77, %v140
    %v142 = vpop.f32.mrb[0].mxu0
    %v143 = vpop.f32.mrb[0].mxu0
    %v144 = vadd.f32 %v82, %v143
    %v145 = vpop.f32.mrb[0].mxu0
    %146 = vdwg.mxu0
    %v147 = vmax.f32 %v133, 0.0
    %v148 = vmax.f32 %v136, 0.0
    %v149 = vmax.f32 %v141, 0.0
    %v150 = vmax.f32 %v144, 0.0
    %v151 = vld [vmem:[%s2] sm:$0xff]
    %v152 = vld [vmem:[%s2 + $0x8] sm:$0x1]
    %v153 = vpack.c.bf16 %v152, %v151
    %v154 = vpack.c.bf16 %v148, %v147
    %v155 = vpack.c.bf16 %v150, %v149
    %v156 = vld [vmem:[%s3] sm:$0xff]
    %v157 = vld [vmem:[%s3 + $0x8] sm:$0x1]
    %159 = vset.pattern.permute.xlu0 0
    %160 = vperm.xlu0 %159, %v156
    %v161 = vpop.permute.xlu0 %160
    %164 = vset.pattern.permute.xlu0 0
    %165 = vperm.xlu0 %164, %v157
    %v166 = vpop.permute.xlu0 %165
    %vm168 = vcmask 261120
    %v170 = vsel %vm168, %v153, 0
    %172 = vmatprep.subr.bf16.mxu0 0
    %173 = vmatpush1.bf16.msra.mxu0 %v154
    %174 = vmatprep.subr.bf16.mxu0 0
    %175 = vmatpush1.bf16.msra.mxu0 %v155
    %176 = vmatprep.subr.bf16.mxu0 0
    %177 = vmatpush1.bf16.msra.mxu0 0
    %178 = vmatprep.subr.bf16.mxu0 0
    %179 = vmatpush1.bf16.msra.mxu0 0
    %180 = vmatprep.subr.bf16.mxu0 0
    %181 = vmatpush1.bf16.msra.mxu0 0
    %182 = vmatprep.subr.bf16.mxu0 0
    %183 = vmatpush1.bf16.msra.mxu0 0
    %184 = vmatprep.subr.bf16.mxu0 0
    %185 = vmatpush1.bf16.msra.mxu0 0
    %186 = vmatprep.subr.bf16.mxu0 0
    %187 = vmatpush1.bf16.msra.mxu0 0
    %188 = vmatprep.subr.bf16.mxu0 0
    %189 = vmatpush1.bf16.msra.mxu0 0
    %190 = vmatprep.subr.bf16.mxu0 0
    %191 = vmatpush1.bf16.msra.mxu0 0
    %192 = vmatprep.subr.bf16.mxu0 0
    %193 = vmatpush1.bf16.msra.mxu0 0
    %194 = vmatprep.subr.bf16.mxu0 0
    %195 = vmatpush1.bf16.msra.mxu0 0
    %196 = vmatprep.subr.bf16.mxu0 0
    %197 = vmatpush1.bf16.msra.mxu0 0
    %198 = vmatprep.subr.bf16.mxu0 0
    %199 = vmatpush1.bf16.msra.mxu0 0
    %200 = vmatprep.subr.bf16.mxu0 0
    %201 = vmatpush1.bf16.msra.mxu0 0
    %202 = vmatprep.subr.bf16.mxu0 0
    %203 = vmatpush1.bf16.msra.mxu0 0
    %204 = vmatprep.mubr.bf16.mxu0 0
    %205 = vmatmul.mubr.bf16.gmra.mrb[0].mxu0 %v170
    %v206 = vpop.f32.mrb[0].mxu0
    %v207 = vadd.f32 %v161, %v206
    %v208 = vpop.f32.mrb[0].mxu0
    %v209 = vpop.f32.mrb[0].mxu0
    %v210 = vadd.f32 %v166, %v209
    %v211 = vpop.f32.mrb[0].mxu0
    %212 = vdwg.mxu0
    %vm213 = vcmask 1040384
    %v214 = vsel %vm213, %v210, -inf
    %v215 = vmax.f32 %v207, %v214
    %v216 = vrot.slane %v215, 4
    %v217 = vmax.f32 %v215, %v216
    %v218 = vrot.slane %v217, 2
    %v219 = vmax.f32 %v217, %v218
    %v220 = vrot.slane %v219, 1
    %v221 = vmax.f32 %v219, %v220
    %v222 = vsub.f32 %v207, %v221
    %v223 = vsub.f32 %v210, %v221
    %v224 = vmul.f32 %v222, 1.442695
    %v225 = vpow.pop %v224
    %v226 = vmul.f32 %v223, 1.442695
    %v227 = vpow.pop %v226
    %v228 = vsel %vm213, %v227, 0.0
    %v229 = vadd.f32 %v225, %v228
    %v230 = vrot.slane %v229, 4
    %v231 = vadd.f32 %v229, %v230
    %v232 = vrot.slane %v231, 2
    %v233 = vadd.f32 %v231, %v232
    %v234 = vrot.slane %v233, 1
    %v235 = vadd.f32 %v233, %v234
    %v236 = vrcp.pop %v235
    %v237 = vmul.f32 %v225, %v236
    %v238 = vmul.f32 %v227, %v236
    %239 = vst [vmem:[%s6] sm:$0xff] %v237
    %240 = vst [vmem:[%s6 + $0x8] sm:$0x1] %v238
    // Predicated region
    $region22: #{policy_net_forward.2} parent=1 // pred_check
      _
    $region23: #{policy_net_forward.2} parent=1 // pred_check_branch
      %242 = sbr.rel (0) target = $region25
    $region24: #{policy_net_forward.2} parent=1 // pred_region
      _
    $region25: #{policy_net_forward.2} parent=1 // pred_fallthru
      _
    // Predicated region
    $region26: #{policy_net_forward.2} parent=1 // pred_check
      _
    $region27: #{policy_net_forward.2} parent=1 // pred_check_branch
      %244 = sbr.rel (0) target = $region29
    $region28: #{policy_net_forward.2} parent=1 // pred_region
      _
    $region29: #{policy_net_forward.2} parent=1 // pred_fallthru
      _

</llo_original>
